<compile_context>
chip_gen: v5e
topology: v5e:2x2
jax: 0.10.0
libtpu: 0.0.40
codegen_flags: <defaults>
</compile_context>

<pallas_src>
import functools

import jax
import jax.numpy as jnp
from jax.experimental import pallas as pl
from jax.experimental.pallas import tpu as pltpu

_LANE = 128          # TPU lane width: pad the output dim up to this for lane-dense stores
_NEG_PAD = -1e30     # bias value for padded output columns -> exp underflows to exactly 0
                     # (kept finite so a consumer doing p * logits never sees 0 * -inf)


def _categorical_kernel(x_ref, wt_ref, b_ref, logits_ref):
    # MXU matmul with f32 accumulation + bias (fully hidden behind the HBM writes).
    raw = jnp.dot(x_ref[...], wt_ref[...], preferred_element_type=jnp.float32) + b_ref[...]
    # Numerically-stable log-softmax over the (padded, lane-dense) output axis.
    m = jnp.max(raw, axis=-1, keepdims=True)          # XLU reduction over full lanes
    shifted = raw - m
    e = jnp.exp(shifted)                              # EUP; exp(pad) == 0 exactly
    s = jnp.sum(e, axis=-1, keepdims=True)            # XLU reduction
    logits_ref[...] = (shifted - jnp.log(s)).astype(logits_ref.dtype)
    # NOTE: probs are intentionally NOT materialized here; consumers use
    # probs = exp(logits) (exact softmax), matching torch.Categorical's lazy .probs.


def _round_up(v, m):
    return (v + m - 1) // m * m


def prepare_categorical_params(weight, bias, lane=_LANE):
    """One-time parameter layout plumbing (do NOT redo per forward call).

    weight: (num_outputs, num_inputs) as produced by nn.Linear; bias: (num_outputs,)
    Returns (wt_pad, b_pad, num_outputs):
      wt_pad: (num_inputs, N_pad)  pre-transposed, zero-padded columns
      b_pad:  (1, N_pad)           padded entries set to a large finite negative constant
                                   so exp(raw_pad) == 0 and softmax/logsumexp stay exact.
    """
    num_outputs, num_inputs = weight.shape
    n_pad = _round_up(num_outputs, lane)
    wt = weight.T.astype(jnp.float32)                                   # (K, N)
    wt_pad = jnp.zeros((num_inputs, n_pad), jnp.float32).at[:, :num_outputs].set(wt)
    b_pad = jnp.full((1, n_pad), _NEG_PAD, jnp.float32).at[0, :num_outputs].set(
        bias.astype(jnp.float32))
    return wt_pad, b_pad, num_outputs


@functools.partial(jax.jit, static_argnames=("block_rows",))
def categorical_forward(x, wt_pad, b_pad, *, block_rows=1024):
    """x: (B, num_inputs) f32.

    Returns normalized logits of shape (B, N_pad) where N_pad = 128-padded num_outputs.
    Columns >= num_outputs are padding (logits ~= -1e30, probs == 0); consumers should
    ignore them (or slice once where convenient) rather than forcing an extra HBM pass
    here.  probs, if needed, are jnp.exp(logits) (exact softmax).
    """
    B, num_inputs = x.shape
    n_pad = wt_pad.shape[1]

    # Row-block size: multiple of 8 sublanes.  Large default tile (HBM-bound regime:
    # ~85% of roofline at tile >= 512 vs ~63% at 256), but capped so that big batches
    # still produce >= ~8 row blocks, letting v7x shard the "parallel" axis across its
    # 2 TensorCores.  VMEM at tb=1024, n_pad=128, K=32: ~1.3 MiB double-buffered —
    # far under every generation's scoped default, no vmem_limit bump needed.
    # TODO(synk): if num_inputs grows into the thousands, re-check v5e's 16 MiB scoped
    # VMEM default (2 bufs x tb x K f32) and lower tb or set vmem_limit_bytes.
    tb = max(8, min(_round_up(block_rows, 8), _round_up(pl.cdiv(B, 8), 8)))

    grid = (pl.cdiv(B, tb),)   # partial last block is masked by Pallas; no jnp.pad pass
    logits = pl.pallas_call(
        _categorical_kernel,
        out_shape=jax.ShapeDtypeStruct((B, n_pad), jnp.float32),
        grid=grid,
        in_specs=[
            pl.BlockSpec((tb, num_inputs), lambda i: (i, 0)),       # row tile of x (pipelined)
            pl.BlockSpec((num_inputs, n_pad), lambda i: (0, 0)),    # W^T resident in VMEM
            pl.BlockSpec((1, n_pad), lambda i: (0, 0)),             # bias resident in VMEM
        ],
        out_specs=pl.BlockSpec((tb, n_pad), lambda i: (i, 0)),
        compiler_params=pltpu.CompilerParams(
            # Rows are independent -> parallel grid axis (lets v7x shard across its 2 TCs).
            dimension_semantics=("parallel",),
        ),
    )(x, wt_pad, b_pad)
    return logits


def orthogonal_init(key, shape, gain):
    """Deterministic orthogonal init matching nn.init.orthogonal_ semantics."""
    rows, cols = shape
    flat = jax.random.normal(key, (max(rows, cols), min(rows, cols)), dtype=jnp.float32)
    q, r = jnp.linalg.qr(flat)
    d = jnp.diag(r)
    q = q * jnp.where(d == 0, 1.0, jnp.sign(d))   # robust: sign(0) -> 1, not 0
    if rows < cols:
        q = q.T
    return gain * q[:rows, :cols]


if __name__ == "__main__":
    key = jax.random.PRNGKey(0)
    k_x, k_w = jax.random.split(key)

    # Small shapes consistent with the module: Categorical(num_inputs=32, num_outputs=16), B=8.
    B, num_inputs, num_outputs = 8, 32, 16
    x = jax.random.normal(k_x, (B, num_inputs), dtype=jnp.float32)

    # Parameters: orthogonal(gain=0.01) weight, zero bias (matching the module's init_).
    weight = orthogonal_init(k_w, (num_outputs, num_inputs), gain=0.01)
    bias = jnp.zeros((num_outputs,), dtype=jnp.float32)

    # One-time layout prep (pre-transposed + lane-padded parameters).
    wt_pad, b_pad, n_out = prepare_categorical_params(weight, bias)

    logits_pad = categorical_forward(x, wt_pad, b_pad)
    jax.block_until_ready(logits_pad)

    # Consumer side: ignore padded columns; probs derived lazily (exactly) from logits.
    logits = logits_pad[:, :n_out]
    probs = jnp.exp(logits)

    # Cross-check against a plain JAX reference of the forward pass.
    raw_ref = x @ weight.T + bias
    logits_ref = raw_ref - jax.scipy.special.logsumexp(raw_ref, axis=-1, keepdims=True)
    probs_ref = jax.nn.softmax(raw_ref, axis=-1)
    assert logits.shape == (B, num_outputs) and probs.shape == (B, num_outputs)
    assert jnp.allclose(logits, logits_ref, atol=1e-5), "logits mismatch"
    assert jnp.allclose(probs, probs_ref, atol=1e-5), "probs mismatch"
    assert jnp.allclose(jnp.sum(probs, axis=-1), 1.0, atol=1e-5), "probs do not sum to 1"
    # Padded columns are exactly zero-probability and hugely negative logits.
    assert jnp.all(jnp.exp(logits_pad[:, n_out:]) == 0.0), "padding not inert"

    print("KERNEL_OK")
</pallas_src>

<mosaic_0001>
module attributes {stable_mosaic.version = 11 : i64} {
  func.func @_categorical_kernel(%arg0: i32, %arg1: memref<8x32xf32, #tpu.memory_space<vmem>>, %arg2: memref<32x128xf32, #tpu.memory_space<vmem>>, %arg3: memref<1x128xf32, #tpu.memory_space<vmem>>, %arg4: memref<8x128xf32, #tpu.memory_space<vmem>>) attributes {dimension_semantics = [#tpu.dimension_semantics<parallel>], iteration_bounds = array<i64: 1>, scalar_prefetch = 0 : i64, scratch_operands = 0 : i64, tpu.core_type = #tpu.core_type<tc>, window_params = [{transform_indices = @transform_0, window_bounds = array<i64: 8, 32>}, {pipeline_mode = #tpu.pipeline_mode<synchronous>, transform_indices = @transform_1, window_bounds = array<i64: 32, 128>}, {pipeline_mode = #tpu.pipeline_mode<synchronous>, transform_indices = @transform_2, window_bounds = array<i64: 1, 128>}, {transform_indices = @transform_3, window_bounds = array<i64: 8, 128>}]} {
    %c0 = arith.constant 0 : index
    %c0_0 = arith.constant 0 : index
    %0 = vector.load %arg1[%c0, %c0_0] : memref<8x32xf32, #tpu.memory_space<vmem>>, vector<8x32xf32>
    %c0_1 = arith.constant 0 : index
    %c0_2 = arith.constant 0 : index
    %1 = vector.load %arg2[%c0_1, %c0_2] : memref<32x128xf32, #tpu.memory_space<vmem>>, vector<32x128xf32>
    %cst = arith.constant dense<0.000000e+00> : vector<8x128xf32>
    %2 = tpu.matmul %0, %1, %cst {dimension_numbers = #tpu.dot_dimension_numbers<[1], [0], [0], [1], [0, 0, 1, 1], [], []>} : vector<8x32xf32>, vector<32x128xf32>, vector<8x128xf32> -> vector<8x128xf32>
    %c0_3 = arith.constant 0 : index
    %c0_4 = arith.constant 0 : index
    %3 = vector.load %arg3[%c0_3, %c0_4] : memref<1x128xf32, #tpu.memory_space<vmem>>, vector<1x128xf32>
    %4 = vector.broadcast %3 : vector<1x128xf32> to vector<8x128xf32>
    %5 = arith.addf %2, %4 : vector<8x128xf32>
    %cst_5 = arith.constant dense<0xFF800000> : vector<8xf32>
    %6 = vector.multi_reduction <maximumf>, %5, %cst_5 [1] : vector<8x128xf32> to vector<8xf32>
    %7 = vector.shape_cast %6 : vector<8xf32> to vector<8x1xf32>
    %8 = vector.broadcast %7 : vector<8x1xf32> to vector<8x128xf32>
    %9 = arith.subf %5, %8 : vector<8x128xf32>
    %10 = math.exp %9 : vector<8x128xf32>
    %cst_6 = arith.constant dense<0.000000e+00> : vector<8xf32>
    %11 = vector.multi_reduction <add>, %10, %cst_6 [1] : vector<8x128xf32> to vector<8xf32>
    %12 = vector.shape_cast %11 : vector<8xf32> to vector<8x1xf32>
    %13 = math.log %12 : vector<8x1xf32>
    %14 = vector.broadcast %13 : vector<8x1xf32> to vector<8x128xf32>
    %15 = arith.subf %9, %14 : vector<8x128xf32>
    %c0_7 = arith.constant 0 : index
    %c0_8 = arith.constant 0 : index
    %16 = vector.load %arg4[%c0_7, %c0_8] : memref<8x128xf32, #tpu.memory_space<vmem>>, vector<8x128xf32>
    tpu.vector_store %arg4[%c0_7, %c0_8], %15 {strides = array<i32>} : memref<8x128xf32, #tpu.memory_space<vmem>>, vector<8x128xf32>,
    return
  }
  func.func @transform_0(%arg0: i32) -> (i32, i32) {
    %c0_i32 = arith.constant 0 : i32
    %c0_i32_0 = arith.constant 0 : i32
    return %arg0, %c0_i32 : i32, i32
  }
  func.func @transform_1(%arg0: i32) -> (i32, i32) {
    %c0_i32 = arith.constant 0 : i32
    %c0_i32_0 = arith.constant 0 : i32
    %c0_i32_1 = arith.constant 0 : i32
    return %c0_i32, %c0_i32_0 : i32, i32
  }
  func.func @transform_2(%arg0: i32) -> (i32, i32) {
    %c0_i32 = arith.constant 0 : i32
    %c0_i32_0 = arith.constant 0 : i32
    %c0_i32_1 = arith.constant 0 : i32
    return %c0_i32, %c0_i32_0 : i32, i32
  }
  func.func @transform_3(%arg0: i32) -> (i32, i32) {
    %c0_i32 = arith.constant 0 : i32
    %c0_i32_0 = arith.constant 0 : i32
    return %arg0, %c0_i32 : i32, i32
  }
}

</mosaic_0001>

<llo_original>
// kernel: categorical_forward.1
$region0: #{categorical_forward.1}
  #allocation0 [shape = 'u32[]', space=smem, size = 0x4, offset = 0x4, fixed_abs, tag = 'smem constant byte address 0x4 - core index']
  #allocation1 [shape = 'u32[72,128]{1,0:T(1,128)}', space=vmem, size = 0x9000, scoped, tag = 'internal scratch']
  %s0 = inlined_call_operand.hbm [shape: f32[8,32], index: 0, kind: input, shape index: {}]
  %s1 = inlined_call_operand.hbm [shape: f32[32,128], index: 1, kind: input, shape index: {}]
  %s2 = inlined_call_operand.vmem [shape: f32[1,128], index: 2, kind: input, shape index: {}]
  %s3 = inlined_call_operand.hbm [shape: f32[8,128], index: 3, kind: output, shape index: {}]
  %s4 = sld [smem:[#allocation0]]
  $region30: #{categorical_forward.1} parent=0
    _
  %s6 = ssub.s32 1, %s4
  %s7 = scalar_select 0, %s6, %s4
  $region1: #{categorical_forward.1} parent=0
    #allocation2 [shape = 'u8[4096]{0}', space=vmem, size = 0x1000, scoped, tag = 'input window, operand 0, single buffered']
    #allocation3 [shape = 's32[1]{0}', space=sflag, size = 0x4, scoped, tag = 'scoped memory for categorical_forward.1']
    #allocation4 [shape = 's32[1]{0}', space=sflag, size = 0x4, scoped, tag = 'scoped memory for categorical_forward.1']
    #allocation5 [shape = 'u8[16384]{0}', space=vmem, size = 0x4000, scoped, tag = 'input window, operand 1, single buffered']
    #allocation6 [shape = 's32[1]{0}', space=sflag, size = 0x4, scoped, tag = 'scoped memory for categorical_forward.1']
    #allocation7 [shape = 'u8[4096]{0}', space=vmem, size = 0x1000, scoped, tag = 'output window, operand 0, single buffered']
    %8 = vsyncpa [#allocation3], 0
    %9 = vsyncpa [#allocation6], 0
    %10 = vsyncpa [#allocation4], 0
    // Predicated region
    $region2: #{categorical_forward.1} parent=1 // pred_check
      _
    $region3: #{categorical_forward.1} parent=1 // pred_check_branch
      %12 = sbr.rel (0) target = $region5
    $region4: #{categorical_forward.1} parent=1 // pred_region
      %14 = vsyncadd [#allocation3], 0
      %s16 = sshll.u32 %s0, 4
      %s17 = int_to_ptr.hbm [resolvable:$true] %s16
      %s18 = sshll.u32 [#allocation2], 4
      %s19 = int_to_ptr.vmem [resolvable:$true] %s18
      %21 = dma.hbm_to_vmem [thread:$0]  %s17, 128, %s19, [#allocation3]
    $region5: #{categorical_forward.1} parent=1 // pred_fallthru
      _
    // Predicated region
    $region6: #{categorical_forward.1} parent=1 // pred_check
      _
    $region7: #{categorical_forward.1} parent=1 // pred_check_branch
      %23 = sbr.rel (0) target = $region9
    $region8: #{categorical_forward.1} parent=1 // pred_region
      %25 = vsyncadd [#allocation6], 0
      %s26 = sshll.u32 %s1, 4
      %s27 = int_to_ptr.hbm [resolvable:$true] %s26
      %s28 = sshll.u32 [#allocation5], 4
      %s29 = int_to_ptr.vmem [resolvable:$true] %s28
      %34 = dma.hbm_to_vmem [thread:$0]  %s27, 512, %s29, [#allocation6], 128, 128, 8
    $region9: #{categorical_forward.1} parent=1 // pred_fallthru
      _
    // Predicated region
    $region10: #{categorical_forward.1} parent=1 // pred_check
      _
    $region11: #{categorical_forward.1} parent=1 // pred_check_branch
      %36 = sbr.rel (0) target = $region13
    $region12: #{categorical_forward.1} parent=1 // pred_region
      _
    $region13: #{categorical_forward.1} parent=1 // pred_fallthru
      _
    // Predicated region
    $region14: #{categorical_forward.1} parent=1 // pred_check
      _
    $region15: #{categorical_forward.1} parent=1 // pred_check_branch
      %38 = sbr.rel (0) target = $region17
    $region16: #{categorical_forward.1} parent=1 // pred_region
      %40 = dma.done [#allocation3], 128
    $region17: #{categorical_forward.1} parent=1 // pred_fallthru
      _
    // Predicated region
    $region18: #{categorical_forward.1} parent=1 // pred_check
      _
    $region19: #{categorical_forward.1} parent=1 // pred_check_branch
      %42 = sbr.rel (0) target = $region21
    $region20: #{categorical_forward.1} parent=1 // pred_region
      %44 = dma.done [#allocation6], 512
    $region21: #{categorical_forward.1} parent=1 // pred_fallthru
      _
    %v45 = vld [vmem:[#allocation2] sm:$0xff]
    %v46 = vld [vmem:[#allocation5] sm:$0xff]
    %v47 = vld [vmem:[#allocation5 + $0x8] sm:$0xff]
    %v48 = vld [vmem:[#allocation5 + $0x10] sm:$0xff]
    %v49 = vld [vmem:[#allocation5 + $0x18] sm:$0xff]
    %v50 = vld [vmem:[%s2] sm:$0x1]
    %v52 = vperm.slane %v50, 0
    %vm54 = vcmask 261120
    %v56 = vsel %vm54, %v45, 0
    %58 = vmatpush.msra.mxu0 0.0
    %59 = vmatpush.msra.mxu0 0.0
    %60 = vmatpush.msra.mxu0 0.0
    %61 = vmatpush.msra.mxu0 0.0
    %62 = vmatpush.msra.mxu0 0.0
    %63 = vmatpush.msra.mxu0 0.0
    %64 = vmatpush.msra.mxu0 0.0
    %65 = vmatpush.msra.mxu0 0.0
    %66 = vmatpush.msra.mxu0 0.0
    %67 = vmatpush.msra.mxu0 0.0
    %68 = vmatpush.msra.mxu0 0.0
    %69 = vmatpush.msra.mxu0 0.0
    %70 = vmatpush.msra.mxu0 %v49
    %71 = vmatpush.msra.mxu0 %v48
    %72 = vmatpush.msra.mxu0 %v47
    %73 = vmatpush.msra.mxu0 %v46
    %74 = vmatmul.f32.gmra.mxu0 %v56
    %v75 = vpop.f32.mrf.mxu0
    %v76 = vadd.f32 %v52, %v75
    %77 = vdwg.mxu0
    %78 = vmax.xlane.f32.xlu0 %v76
    %v79 = vpop.xlane.xlu0 %78
    %v80 = vsub.f32 %v76, %v79
    %v81 = vmul.f32 %v80, 1.442695
    %v82 = vpow.pop %v81
    %83 = vadd.xlane.f32.xlu0 %v82
    %v84 = vpop.xlane.xlu0 %83
    %v85 = vlog2.pop %v84
    %v86 = vmul.f32 %v85, 0.6931472
    %v87 = vsub.f32 %v80, %v86
    %88 = vst [vmem:[#allocation7] sm:$0xff] %v87
    // Predicated region
    $region22: #{categorical_forward.1} parent=1 // pred_check
      _
    $region23: #{categorical_forward.1} parent=1 // pred_check_branch
      %90 = sbr.rel (0) target = $region25
    $region24: #{categorical_forward.1} parent=1 // pred_region
      %92 = vsyncadd [#allocation4], 0
      %s94 = sshll.u32 [#allocation7], 4
      %s95 = int_to_ptr.vmem [resolvable:$true] %s94
      %s96 = sshll.u32 %s3, 4
      %s97 = int_to_ptr.hbm [resolvable:$true] %s96
      %99 = dma.vmem_to_hbm [thread:$0]  %s95, 128, %s97, [#allocation4]
    $region25: #{categorical_forward.1} parent=1 // pred_fallthru
      _
    // Predicated region
    $region26: #{categorical_forward.1} parent=1 // pred_check
      _
    $region27: #{categorical_forward.1} parent=1 // pred_check_branch
      %101 = sbr.rel (0) target = $region29
    $region28: #{categorical_forward.1} parent=1 // pred_region
      %103 = dma.done [#allocation4], 128
    $region29: #{categorical_forward.1} parent=1 // pred_fallthru
      _
    %104 = vsyncpa [#allocation3], 1
    %105 = vsyncpa [#allocation6], 1
    %106 = vsyncpa [#allocation4], 1

</llo_original>
